<compile_context>
chip_gen: v7x
topology: tpu7x:2x2x1
jax: 0.10.0
libtpu: 0.0.40
codegen_flags: <defaults>
</compile_context>

<pallas_src>
import jax
import jax.numpy as jnp
from jax.experimental import pallas as pl
from jax.experimental.pallas import tpu as pltpu

# ----- small synthetic shapes consistent with the module -----
BATCH = 2
CHANNELS = 3          # RGB (CLIP normalization constants are 3-channel)
RES = 16              # stands in for model.visual.input_resolution
OUTPUT_DIM = 32       # stands in for model.visual.output_dim
LANE = 128

CLIP_MEAN = (0.48145466, 0.4578275, 0.40821073)
CLIP_STD = (0.26862954, 0.26130258, 0.27577711)


# ---------------- fused encode kernel: scale * (x_flat @ W_folded) + b_folded ----------------

def _encode_kernel(flag_ref, x_ref, w_ref, b_ref, o_ref, acc_ref):
    # grid = (M tiles, N tiles, K tiles); K (reduction) is innermost / "arbitrary".
    k = pl.program_id(2)

    @pl.when(k == 0)
    def _():
        acc_ref[...] = jnp.zeros_like(acc_ref)

    # bf16 operands, f32 accumulation on the MXU.
    acc_ref[...] += jnp.dot(x_ref[...], w_ref[...],
                            preferred_element_type=jnp.float32)

    @pl.when(k == pl.num_programs(2) - 1)
    def _():
        # `scale` implements the `if max(input) > 10: input /= 255` branch; it is
        # applied in the epilogue instead of as an extra full-image pass.
        scale = jnp.where(flag_ref[0] == 1,
                          jnp.float32(1.0 / 255.0), jnp.float32(1.0))
        o_ref[...] = (acc_ref[...] * scale + b_ref[...]).astype(o_ref.dtype)


def _pick_tk(din):
    # Largest K tile (multiple of 128) dividing Din; keeps double-buffered A/B
    # tiles far under the 32 MiB scoped VMEM default (64 MiB physical on v7x).
    for t in (512, 256, 128):
        if din >= t and din % t == 0:
            return t
    return din


def encode_image(x_flat, w_folded, b_folded, div255_flag):
    """x_flat: (N, Din) bf16, w_folded: (Din, Dout) bf16, b_folded: (1, Dout) f32."""
    n, din = x_flat.shape
    dout = w_folded.shape[1]
    tm = n if n < 128 else 128         # 128-aligned M tiles at real batch sizes
    tn = dout if dout < 256 else 256   # 256-aligned N tiles (v6e/v7x MXU geometry)
    tk = _pick_tk(din)

    grid = (pl.cdiv(n, tm), pl.cdiv(dout, tn), pl.cdiv(din, tk))

    return pl.pallas_call(
        _encode_kernel,
        out_shape=jax.ShapeDtypeStruct((n, dout), jnp.float32),
        grid_spec=pltpu.PrefetchScalarGridSpec(
            num_scalar_prefetch=1,                      # int32 /255 flag in SMEM
            grid=grid,
            in_specs=[
                pl.BlockSpec((tm, tk), lambda i, j, k, flag: (i, k)),   # x
                pl.BlockSpec((tk, tn), lambda i, j, k, flag: (k, j)),   # W_folded
                pl.BlockSpec((1, tn), lambda i, j, k, flag: (0, j)),    # b_folded
            ],
            out_specs=pl.BlockSpec((tm, tn), lambda i, j, k, flag: (i, j)),
            scratch_shapes=[pltpu.VMEM((tm, tn), jnp.float32)],
        ),
        compiler_params=pltpu.CompilerParams(
            dimension_semantics=("parallel", "parallel", "arbitrary")),
    )(div255_flag, x_flat, w_folded, b_folded)


# ---------------- cosine similarity kernel (LIV.sim, metric='cos') ----------------

def _cossim_kernel(a_ref, b_ref, o_ref):
    a = a_ref[...]
    b = b_ref[...]
    eps = jnp.float32(1e-8)   # matches torch CosineSimilarity eps clamp
    dot = jnp.sum(a * b, axis=-1, keepdims=True)
    na = jnp.maximum(jnp.sqrt(jnp.sum(a * a, axis=-1, keepdims=True)), eps)
    nb = jnp.maximum(jnp.sqrt(jnp.sum(b * b, axis=-1, keepdims=True)), eps)
    # Lane-dense (N, 128) store (unmasked vst); the wrapper reads column 0.
    o_ref[...] = jnp.broadcast_to(dot / (na * nb), o_ref.shape)


def cosine_sim(a, b):
    """Row-wise cosine similarity of two (N, D) arrays -> (N,)."""
    n = a.shape[0]
    out = pl.pallas_call(
        _cossim_kernel,
        out_shape=jax.ShapeDtypeStruct((n, LANE), jnp.float32),
        in_specs=[pl.BlockSpec(memory_space=pltpu.MemorySpace.VMEM)] * 2,
        out_specs=pl.BlockSpec(memory_space=pltpu.MemorySpace.VMEM),
    )(a.astype(jnp.float32), b.astype(jnp.float32))
    return out[:, 0]


# ---------------- LIV module (Pallas-backed) ----------------

class LIVPallas:
    def __init__(self, key, output_dim=OUTPUT_DIM, metric="cos",
                 channels=CHANNELS, input_resolution=RES):
        self.metric = metric
        self.output_dim = output_dim
        self.input_resolution = input_resolution
        self.channels = channels
        din = channels * input_resolution * input_resolution
        k1, k2 = jax.random.split(key)
        # Deterministic stand-in parameters for model.encode_image's projection head.
        self.w = (jax.random.normal(k1, (din, output_dim), jnp.float32)
                  / jnp.sqrt(jnp.float32(din)))
        self.b = jax.random.normal(k2, (1, output_dim), jnp.float32) * 0.01

        # Fold the CLIP per-channel normalize into the projection at init time:
        #   ((x*s - mean)/std) @ W + b == s * (x @ (W/std_rows)) + (b - (mean/std)_rows @ W)
        hw = input_resolution * input_resolution
        mean_rows = jnp.repeat(jnp.asarray(CLIP_MEAN, jnp.float32), hw)          # (din,)
        inv_std_rows = jnp.repeat(1.0 / jnp.asarray(CLIP_STD, jnp.float32), hw)  # (din,)
        w_folded = self.w * inv_std_rows[:, None]
        b_folded = self.b - (mean_rows * inv_std_rows)[None, :] @ self.w
        # bf16 MXU operands; accumulation stays f32 inside the kernel.
        self.w_folded = w_folded.astype(jnp.bfloat16)
        self.b_folded = b_folded.astype(jnp.float32)

    def forward(self, x, modality="vision", normalize=True):
        if modality != "vision":
            # TODO(synk): text branch needs CLIP's text transformer, which the
            # reference module detaches (sets to None) when grad_text=False.
            raise NotImplementedError
        x = x.astype(jnp.float32)
        # `if max(input) > 10` uses the full-batch max (matches reference semantics);
        # the /255 itself is folded into the matmul epilogue, so no extra image pass.
        div255_flag = (jnp.max(x) > 10.0).astype(jnp.int32).reshape(1)
        # Resize(input_resolution) + CenterCrop(input_resolution) are identities here
        # because synthetic inputs already have H == W == input_resolution.
        # TODO(synk): bilinear Resize / CenterCrop for mismatched input sizes.
        # Lane-dense flatten: last dim C*H*W is a multiple of 128.
        x_flat = x.reshape(x.shape[0], -1).astype(jnp.bfloat16)
        # encode_image: CLIP RN50 ModifiedResNet replaced by deterministic
        # flatten -> linear projection to output_dim (normalize pre-folded).
        # TODO(synk): full CLIP ModifiedResNet encode_image (attention-pooled ResNet).
        return encode_image(x_flat, self.w_folded, self.b_folded, div255_flag)

    def sim(self, t1, t2):
        if self.metric == "cos":
            return cosine_sim(t1, t2)
        elif self.metric == "l2":
            return -jnp.linalg.norm(t1 - t2, axis=-1)
        raise NotImplementedError

    def get_reward(self, e0, es, le, encoded=True):
        assert encoded is True
        return self.sim(es, le)


# ---------------- demo / self-check ----------------

if __name__ == "__main__":
    key = jax.random.PRNGKey(0)
    k_img, k_txt, k_model = jax.random.split(key, 3)

    # Raw uint8-range image batch (max > 10 triggers the /255 branch), NCHW.
    x = jax.random.uniform(k_img, (BATCH, CHANNELS, RES, RES),
                           dtype=jnp.float32) * 255.0
    # Pretend "language embedding" for get_reward.
    le = jax.random.normal(k_txt, (BATCH, OUTPUT_DIM), jnp.float32)

    liv = LIVPallas(k_model)

    feats = liv.forward(x, modality="vision")
    reward = liv.get_reward(feats, feats, le)
    feats, reward = jax.block_until_ready((feats, reward))

    # Pure-JAX f32 reference of the original (un-folded) math.
    mean = jnp.asarray(CLIP_MEAN, jnp.float32).reshape(1, CHANNELS, 1, 1)
    std = jnp.asarray(CLIP_STD, jnp.float32).reshape(1, CHANNELS, 1, 1)
    ref_x = (x / 255.0 - mean) / std
    ref_feats = ref_x.reshape(BATCH, -1) @ liv.w + liv.b
    fn = ref_feats / jnp.linalg.norm(ref_feats, axis=-1, keepdims=True)
    ln = le / jnp.linalg.norm(le, axis=-1, keepdims=True)
    ref_reward = jnp.sum(fn * ln, axis=-1)

    assert feats.shape == (BATCH, OUTPUT_DIM)
    assert reward.shape == (BATCH,)
    # Tolerances account for bf16 MXU operands (f32 accumulation).
    assert jnp.allclose(feats, ref_feats, atol=5e-2, rtol=5e-2)
    assert jnp.allclose(reward, ref_reward, atol=5e-2, rtol=5e-2)
    assert jnp.all(jnp.isfinite(feats)) and jnp.all(jnp.isfinite(reward))

    print("KERNEL_OK")
</pallas_src>

<mosaic_0001>
module attributes {stable_mosaic.version = 11 : i64} {
  func.func @_encode_kernel(%arg0: i32, %arg1: i32, %arg2: i32, %arg3: memref<1xi32, #tpu.memory_space<smem>>, %arg4: memref<2x256xbf16, #tpu.memory_space<vmem>>, %arg5: memref<256x32xbf16, #tpu.memory_space<vmem>>, %arg6: memref<1x32xf32, #tpu.memory_space<vmem>>, %arg7: memref<2x32xf32, #tpu.memory_space<vmem>>, %arg8: memref<2x32xf32, #tpu.memory_space<vmem>>) attributes {dimension_semantics = [#tpu.dimension_semantics<parallel>, #tpu.dimension_semantics<parallel>, #tpu.dimension_semantics<arbitrary>], iteration_bounds = array<i64: 1, 1, 3>, scalar_prefetch = 1 : i64, scratch_operands = 1 : i64, tpu.core_type = #tpu.core_type<tc>, window_params = [{transform_indices = @transform_0, window_bounds = array<i64: 2, 256>}, {transform_indices = @transform_1, window_bounds = array<i64: 256, 32>}, {transform_indices = @transform_2, window_bounds = array<i64: 1, 32>}, {transform_indices = @transform_3, window_bounds = array<i64: 2, 32>}]} {
    %c0_i32 = arith.constant 0 : i32
    %0 = arith.cmpi eq, %arg2, %c0_i32 : i32
    %1 = arith.extui %0 : i1 to i32
    %c0_i32_0 = arith.constant 0 : i32
    %2 = arith.cmpi ne, %1, %c0_i32_0 : i32
    scf.if %2 {
      %cst_9 = arith.constant 0.000000e+00 : f32
      %12 = vector.broadcast %cst_9 : f32 to vector<2x32xf32>
      %c0_10 = arith.constant 0 : index
      %c0_11 = arith.constant 0 : index
      %13 = vector.load %arg8[%c0_10, %c0_11] : memref<2x32xf32, #tpu.memory_space<vmem>>, vector<2x32xf32>
      tpu.vector_store %arg8[%c0_10, %c0_11], %12 {strides = array<i32>} : memref<2x32xf32, #tpu.memory_space<vmem>>, vector<2x32xf32>,
    } else {
    }
    %c0 = arith.constant 0 : index
    %c0_1 = arith.constant 0 : index
    %3 = vector.load %arg8[%c0, %c0_1] : memref<2x32xf32, #tpu.memory_space<vmem>>, vector<2x32xf32>
    %c0_2 = arith.constant 0 : index
    %c0_3 = arith.constant 0 : index
    %4 = vector.load %arg4[%c0_2, %c0_3] : memref<2x256xbf16, #tpu.memory_space<vmem>>, vector<2x256xbf16>
    %c0_4 = arith.constant 0 : index
    %c0_5 = arith.constant 0 : index
    %5 = vector.load %arg5[%c0_4, %c0_5] : memref<256x32xbf16, #tpu.memory_space<vmem>>, vector<256x32xbf16>
    %cst = arith.constant dense<0.000000e+00> : vector<2x32xf32>
    %6 = tpu.matmul %4, %5, %cst {dimension_numbers = #tpu.dot_dimension_numbers<[1], [0], [0], [1], [0, 0, 1, 1], [], []>} : vector<2x256xbf16>, vector<256x32xbf16>, vector<2x32xf32> -> vector<2x32xf32>
    %7 = arith.addf %3, %6 : vector<2x32xf32>
    %c0_6 = arith.constant 0 : index
    %c0_7 = arith.constant 0 : index
    %8 = vector.load %arg8[%c0_6, %c0_7] : memref<2x32xf32, #tpu.memory_space<vmem>>, vector<2x32xf32>
    tpu.vector_store %arg8[%c0_6, %c0_7], %7 {strides = array<i32>} : memref<2x32xf32, #tpu.memory_space<vmem>>, vector<2x32xf32>,
    %c2_i32 = arith.constant 2 : i32
    %9 = arith.cmpi eq, %arg2, %c2_i32 : i32
    %10 = arith.extui %9 : i1 to i32
    %c0_i32_8 = arith.constant 0 : i32
    %11 = arith.cmpi ne, %10, %c0_i32_8 : i32
    scf.if %11 {
      %c0_9 = arith.constant 0 : index
      %12 = memref.load %arg3[%c0_9] : memref<1xi32, #tpu.memory_space<smem>>
      %c1_i32 = arith.constant 1 : i32
      %13 = arith.cmpi eq, %12, %c1_i32 : i32
      %cst_10 = arith.constant 0.00392156886 : f32
      %cst_11 = arith.constant 1.000000e+00 : f32
      %14 = arith.select %13, %cst_10, %cst_11 : f32
      %c0_12 = arith.constant 0 : index
      %c0_13 = arith.constant 0 : index
      %15 = vector.load %arg8[%c0_12, %c0_13] : memref<2x32xf32, #tpu.memory_space<vmem>>, vector<2x32xf32>
      %16 = vector.broadcast %14 : f32 to vector<2x32xf32>
      %17 = arith.mulf %15, %16 : vector<2x32xf32>
      %c0_14 = arith.constant 0 : index
      %c0_15 = arith.constant 0 : index
      %18 = vector.load %arg6[%c0_14, %c0_15] : memref<1x32xf32, #tpu.memory_space<vmem>>, vector<1x32xf32>
      %19 = vector.broadcast %18 : vector<1x32xf32> to vector<2x32xf32>
      %20 = arith.addf %17, %19 : vector<2x32xf32>
      %c0_16 = arith.constant 0 : index
      %c0_17 = arith.constant 0 : index
      %21 = vector.load %arg7[%c0_16, %c0_17] : memref<2x32xf32, #tpu.memory_space<vmem>>, vector<2x32xf32>
      tpu.vector_store %arg7[%c0_16, %c0_17], %20 {strides = array<i32>} : memref<2x32xf32, #tpu.memory_space<vmem>>, vector<2x32xf32>,
    } else {
    }
    return
  }
  func.func @transform_0(%arg0: i32, %arg1: i32, %arg2: i32, %arg3: memref<1xi32, #tpu.memory_space<smem>>) -> (i32, i32) {
    %c0_i32 = arith.constant 0 : i32
    return %arg0, %arg2 : i32, i32
  }
  func.func @transform_1(%arg0: i32, %arg1: i32, %arg2: i32, %arg3: memref<1xi32, #tpu.memory_space<smem>>) -> (i32, i32) {
    %c0_i32 = arith.constant 0 : i32
    return %arg2, %arg1 : i32, i32
  }
  func.func @transform_2(%arg0: i32, %arg1: i32, %arg2: i32, %arg3: memref<1xi32, #tpu.memory_space<smem>>) -> (i32, i32) {
    %c0_i32 = arith.constant 0 : i32
    %c0_i32_0 = arith.constant 0 : i32
    return %c0_i32, %arg1 : i32, i32
  }
  func.func @transform_3(%arg0: i32, %arg1: i32, %arg2: i32, %arg3: memref<1xi32, #tpu.memory_space<smem>>) -> (i32, i32) {
    %c0_i32 = arith.constant 0 : i32
    return %arg0, %arg1 : i32, i32
  }
}

</mosaic_0001>

<llo_original>
// kernel: tpu_custom_call.1
$region0: #{tpu_custom_call.1}
  #allocation0 [shape = 'u32[]', space=smem, size = 0x4, offset = 0x4, fixed_abs, tag = 'smem constant byte address 0x4 - core index']
  #allocation1 [shape = 'u32[144,128]{1,0:T(1,128)}', space=vmem, size = 0x12000, scoped, tag = 'internal scratch']
  #allocation2 [shape = 'f32[2,32]{1,0:T(2,128)}', space=vmem, size = 0x400, scoped, tag = 'scratch operand']
  #allocation3 [shape = 's32[1]{0}', space=sflag, size = 0x4, scoped, tag = 'scoped memory for tpu_custom_call.1']
  #allocation4 [shape = 's32[1]{0:T(128)S(6)}', space=smem, size = 0x200, scoped, tag = 'prefetched SMEM operand 0']
  %s0 = inlined_call_operand.<no memory space> [shape: s32[1], index: 0, kind: input, shape index: {}]
  %s1 = inlined_call_operand.vmem [shape: bf16[2,768], index: 1, kind: input, shape index: {}]
  %s2 = inlined_call_operand.vmem [shape: bf16[768,32], index: 2, kind: input, shape index: {}]
  %s3 = inlined_call_operand.vmem [shape: f32[1,32], index: 3, kind: input, shape index: {}]
  %s4 = inlined_call_operand.hbm [shape: f32[2,32], index: 4, kind: output, shape index: {}]
  %s5 = sld [smem:[#allocation0]]
  $region53: #{tpu_custom_call.1} parent=0
    _
  %s7 = ssub.s32 1, %s5
  %s8 = scalar_select 0, %s7, %s5
  %9 = sst [smem:[#allocation4]] %s0
  $region1: #{tpu_custom_call.1} parent=0
    #allocation5 [shape = 'u8[1024]{0}', space=vmem, size = 0x400, scoped, tag = 'output window, operand 0, single buffered']
    #allocation6 [shape = 's32[2]{0}', space=sflag, size = 0x8, scoped, tag = 'scoped memory for tpu_custom_call.1']
    %10 = vsyncpa [#allocation6], 0
    loop: start=0, step=1, limit=5
    $region2: #{tpu_custom_call.1} parent=1 // loop_pre_header
      _
    $region3: #{tpu_custom_call.1} parent=1 // loop_header
      %s12 = sphi 0, %s16
      %p13 = scmp.ge.s32.totalorder %s12, 5
      %s19 = sphi 0, %s38
      %s20 = sphi 0, %s34
      %s21 = sphi 0, %s30
      %s22 = sphi 0, %s19
      %s23 = sphi 0, %s20
      %s24 = sphi 0, %s21
      %s25 = sphi 0, %s22
      %s26 = sphi 0, %s23
      %s27 = sphi 0, %s24
      %s43 = sphi 0, %s45
      %s46 = sphi 0, %s43
      %s47 = sphi 0, %s46
      %s63 = sphi 0, %s47
      %s71 = sphi 0, %s73
      %s74 = sphi 0, %s71
      %s75 = sphi 0, %s74
      %s91 = sphi 0, %s75
      %s97 = sphi 0, %s99
      %s100 = sphi 0, %s97
      %s101 = sphi 0, %s100
      %s117 = sphi 0, %s101
      %s125 = sphi 0, %s127
      %s128 = sphi 0, %s125
      %s129 = sphi 0, %s128
      %s145 = sphi 0, %s129
    $region4: #{tpu_custom_call.1} parent=1 // loop_header_branch
      %15 = sbr.rel (%p13) target = $region8
    $region5: #{tpu_custom_call.1} parent=1 // loop_body
      %s17 = ssub.s32 %s12, 1
      %s18 = ssub.s32 %s12, 2
      %s28 = sadd.s32 1, %s21
      %p29 = scmp.ge.s32.totalorder %s28, 3
      %s30 = scalar_select %p29, 0, %s28
      %s31 = sadd.s32 1, %s20
      %s32 = scalar_select %p29, %s31, %s20
      %p33 = scmp.ge.s32.totalorder %s32, 1
      %s34 = scalar_select %p33, 0, %s32
      %s35 = sadd.s32 1, %s19
      %s36 = scalar_select %p33, %s35, %s19
      %p37 = scmp.ge.s32.totalorder %s36, 1
      %s38 = scalar_select %p37, 0, %s36
      %s39 = ssub.s32 %s19, %s38
      %s40 = ssub.s32 %s21, %s30
      %s41 = sor.u32 %s39, %s40
      %p42 = scmp.eq.s32.totalorder %s41, 0
      %s44 = sadd.s32 %s43, 1
      %s45 = scalar_select %p42, %s43, %s44
      %p48 = pneg %p42
      %p49 = scmp.eq.s32.totalorder %s12, 2
      %p50 = por %p48, %p49
      %p51 = scmp.ne.s32.totalorder %s43, %s46
      %p52 = scmp.eq.s32.totalorder %s12, 0
      %p53 = por %p51, %p52
      %p54 = scmp.ne.s32.totalorder %s43, %s46
      %p55 = scmp.eq.s32.totalorder %s17, 2
      %p56 = por %p54, %p55
      %p57 = scmp.ne.s32.totalorder %s46, %s47
      %p58 = scmp.eq.s32.totalorder %s17, 0
      %p59 = por %p57, %p58
      %p60 = scmp.ne.s32.totalorder %s46, %s47
      %p61 = scmp.eq.s32.totalorder %s18, 2
      %p62 = por %p60, %p61
      %p64 = scmp.ne.s32.totalorder %s47, %s63
      %p65 = scmp.eq.s32.totalorder %s18, 0
      %p66 = por %p64, %p65
      %s67 = ssub.s32 %s21, %s30
      %s68 = ssub.s32 %s20, %s34
      %s69 = sor.u32 %s67, %s68
      %p70 = scmp.eq.s32.totalorder %s69, 0
      %s72 = sadd.s32 %s71, 1
      %s73 = scalar_select %p70, %s71, %s72
      %p76 = pneg %p70
      %p77 = scmp.eq.s32.totalorder %s12, 2
      %p78 = por %p76, %p77
      %p79 = scmp.ne.s32.totalorder %s71, %s74
      %p80 = scmp.eq.s32.totalorder %s12, 0
      %p81 = por %p79, %p80
      %p82 = scmp.ne.s32.totalorder %s71, %s74
      %p83 = scmp.eq.s32.totalorder %s17, 2
      %p84 = por %p82, %p83
      %p85 = scmp.ne.s32.totalorder %s74, %s75
      %p86 = scmp.eq.s32.totalorder %s17, 0
      %p87 = por %p85, %p86
      %p88 = scmp.ne.s32.totalorder %s74, %s75
      %p89 = scmp.eq.s32.totalorder %s18, 2
      %p90 = por %p88, %p89
      %p92 = scmp.ne.s32.totalorder %s75, %s91
      %p93 = scmp.eq.s32.totalorder %s18, 0
      %p94 = por %p92, %p93
      %s95 = ssub.s32 %s20, %s34
      %p96 = scmp.eq.s32.totalorder %s95, 0
      %s98 = sadd.s32 %s97, 1
      %s99 = scalar_select %p96, %s97, %s98
      %p102 = pneg %p96
      %p103 = scmp.eq.s32.totalorder %s12, 2
      %p104 = por %p102, %p103
      %p105 = scmp.ne.s32.totalorder %s97, %s100
      %p106 = scmp.eq.s32.totalorder %s12, 0
      %p107 = por %p105, %p106
      %p108 = scmp.ne.s32.totalorder %s97, %s100
      %p109 = scmp.eq.s32.totalorder %s17, 2
      %p110 = por %p108, %p109
      %p111 = scmp.ne.s32.totalorder %s100, %s101
      %p112 = scmp.eq.s32.totalorder %s17, 0
      %p113 = por %p111, %p112
      %p114 = scmp.ne.s32.totalorder %s100, %s101
      %p115 = scmp.eq.s32.totalorder %s18, 2
      %p116 = por %p114, %p115
      %p118 = scmp.ne.s32.totalorder %s101, %s117
      %p119 = scmp.eq.s32.totalorder %s18, 0
      %p120 = por %p118, %p119
      %s121 = ssub.s32 %s19, %s38
      %s122 = ssub.s32 %s20, %s34
      %s123 = sor.u32 %s121, %s122
      %p124 = scmp.eq.s32.totalorder %s123, 0
      %s126 = sadd.s32 %s125, 1
      %s127 = scalar_select %p124, %s125, %s126
      %p130 = pneg %p124
      %p131 = scmp.eq.s32.totalorder %s12, 2
      %p132 = por %p130, %p131
      %p133 = scmp.ne.s32.totalorder %s125, %s128
      %p134 = scmp.eq.s32.totalorder %s12, 0
      %p135 = por %p133, %p134
      %p136 = scmp.ne.s32.totalorder %s125, %s128
      %p137 = scmp.eq.s32.totalorder %s17, 2
      %p138 = por %p136, %p137
      %p139 = scmp.ne.s32.totalorder %s128, %s129
      %p140 = scmp.eq.s32.totalorder %s17, 0
      %p141 = por %p139, %p140
      %p142 = scmp.ne.s32.totalorder %s128, %s129
      %p143 = scmp.eq.s32.totalorder %s18, 2
      %p144 = por %p142, %p143
      %p146 = scmp.ne.s32.totalorder %s129, %s145
      %p147 = scmp.eq.s32.totalorder %s18, 0
      %p148 = por %p146, %p147
      %p149 = scmp.le.s32.totalorder 1, %s12
      %p150 = scmp.lt.s32.totalorder %s12, 4
      %p151 = pnand %p149, %p150
      %p152 = pneg %p151
      // Predicated region
      $region9: #{tpu_custom_call.1} parent=5 // pred_check
        _
      $region10: #{tpu_custom_call.1} parent=5 // pred_check_branch
        %154 = sbr.rel (%p151) target = $region12
      $region11: #{tpu_custom_call.1} parent=5 // pred_region
        %s155 = ssub.s32 %s12, 1
        // Predicated region
        $region13: #{tpu_custom_call.1} parent=11 // pred_check
          %p156 = pneg %p113
        $region14: #{tpu_custom_call.1} parent=11 // pred_check_branch
          %158 = sbr.rel (%p156) target = $region16
        $region15: #{tpu_custom_call.1} parent=11 // pred_region
          %p159 = scmp.lt.s32.totalorder %s23, 0
          %s160 = scalar_select %p159, %s23, 0
          %s161 = scalar_lea.vmem %s3, %s160
        $region16: #{tpu_custom_call.1} parent=11 // pred_fallthru
          _
      $region12: #{tpu_custom_call.1} parent=5 // pred_fallthru
        _
      %p162 = scmp.lt.s32.totalorder %s12, 3
      // Predicated region
      $region17: #{tpu_custom_call.1} parent=5 // pred_check
        %p163 = pneg %p162
      $region18: #{tpu_custom_call.1} parent=5 // pred_check_branch
        %165 = sbr.rel (%p163) target = $region20
      $region19: #{tpu_custom_call.1} parent=5 // pred_region
        // Predicated region
        $region21: #{tpu_custom_call.1} parent=19 // pred_check
          %p166 = pneg %p53
        $region22: #{tpu_custom_call.1} parent=19 // pred_check_branch
          %168 = sbr.rel (%p166) target = $region24
        $region23: #{tpu_custom_call.1} parent=19 // pred_region
          %s169 = smul.u32 2, %s21
          %p170 = scmp.lt.s32.totalorder %s19, 0
          %s171 = scalar_select %p170, %s19, 0
          %p172 = scmp.lt.s32.totalorder %s169, 5
          %s173 = scalar_select %p172, %s169, 5
          %s174 = smul.addr %s171, 6
          %s175 = sadd.s32 %s173, %s174
          %s176 = scalar_lea.vmem %s1, %s175
          %s177 = smul.u32 2, %s21
        $region24: #{tpu_custom_call.1} parent=19 // pred_fallthru
          _
        // Predicated region
        $region25: #{tpu_custom_call.1} parent=19 // pred_check
          %p178 = pneg %p81
        $region26: #{tpu_custom_call.1} parent=19 // pred_check_branch
          %180 = sbr.rel (%p178) target = $region28
        $region27: #{tpu_custom_call.1} parent=19 // pred_region
          %s181 = smul.u32 32, %s21
          %p182 = scmp.lt.s32.totalorder %s181, 95
          %s183 = scalar_select %p182, %s181, 95
          %p184 = scmp.lt.s32.totalorder %s20, 0
          %s185 = scalar_select %p184, %s20, 0
          %s186 = sadd.s32 %s185, %s183
          %s187 = smul.addr %s186, 4
          %s188 = scalar_lea.vmem %s2, %s187
          %s189 = smul.u32 32, %s21
        $region28: #{tpu_custom_call.1} parent=19 // pred_fallthru
          _
      $region20: #{tpu_custom_call.1} parent=5 // pred_fallthru
        _
      %p190 = scmp.le.s32.totalorder 1, %s12
      %p191 = scmp.lt.s32.totalorder %s12, 4
      %p192 = pnand %p190, %p191
      %p193 = pneg %p192
      // Predicated region
      $region29: #{tpu_custom_call.1} parent=5 // pred_check
        _
      $region30: #{tpu_custom_call.1} parent=5 // pred_check_branch
        %195 = sbr.rel (%p192) target = $region32
      $region31: #{tpu_custom_call.1} parent=5 // pred_region
        %s196 = ssub.s32 %s12, 1
        %s197 = smul.u32 2, %s24
        %p198 = scmp.lt.s32.totalorder %s22, 0
        %s199 = scalar_select %p198, %s22, 0
        %p200 = scmp.lt.s32.totalorder %s197, 5
        %s201 = scalar_select %p200, %s197, 5
        %s202 = smul.addr %s199, 6
        %s203 = sadd.s32 %s201, %s202
        %s204 = scalar_lea.vmem %s1, %s203
        %p205 = pneg %p59
        %p206 = pneg %p56
        %s207 = smul.u32 32, %s24
        %p208 = scmp.lt.s32.totalorder %s207, 95
        %s209 = scalar_select %p208, %s207, 95
        %p210 = scmp.lt.s32.totalorder %s23, 0
        %s211 = scalar_select %p210, %s23, 0
        %s212 = sadd.s32 %s211, %s209
        %s213 = smul.addr %s212, 4
        %s214 = scalar_lea.vmem %s2, %s213
        %p215 = pneg %p87
        %p216 = pneg %p84
        %p217 = scmp.lt.s32.totalorder %s23, 0
        %s218 = scalar_select %p217, %s23, 0
        %s219 = scalar_lea.vmem %s3, %s218
        %p220 = pneg %p113
        %p221 = pneg %p110
        %p222 = pneg %p141
        %p223 = pneg %p138
        %s224 = smul.u32 2, %s24
        %p225 = scmp.lt.s32.totalorder %s22, 0
        %s226 = scalar_select %p225, %s22, 0
        %p227 = scmp.lt.s32.totalorder %s224, 5
        %s228 = scalar_select %p227, %s224, 5
        %s229 = smul.addr %s226, 6
        %s230 = sadd.s32 %s228, %s229
        %s231 = scalar_lea.vmem %s1, %s230
        %s232 = smul.u32 2, %s24
        %s233 = smul.u32 32, %s24
        %p234 = scmp.lt.s32.totalorder %s233, 95
        %s235 = scalar_select %p234, %s233, 95
        %p236 = scmp.lt.s32.totalorder %s23, 0
        %s237 = scalar_select %p236, %s23, 0
        %s238 = sadd.s32 %s237, %s235
        %s239 = smul.addr %s238, 4
        %s240 = scalar_lea.vmem %s2, %s239
        %s241 = smul.u32 32, %s24
        %p242 = scmp.lt.s32.totalorder %s23, 0
        %s243 = scalar_select %p242, %s23, 0
        %s244 = scalar_lea.vmem %s3, %s243
        %p246 = scmp.eq.s32.totalorder %s24, 0
        // Predicated region
        $region33: #{tpu_custom_call.1} parent=31 // pred_check
          %p247 = pneg %p246
        $region34: #{tpu_custom_call.1} parent=31 // pred_check_branch
          %249 = sbr.rel (%p247) target = $region36
        $region35: #{tpu_custom_call.1} parent=31 // pred_region
          %vm250 = vcmask 254976
          %251 = vst.msk [vmem:[#allocation2] sm:$0x3] %vm250, 0.0
        $region36: #{tpu_custom_call.1} parent=31 // pred_fallthru
          _
        %v252 = vld [vmem:[#allocation2] sm:$0x3]
        %v253 = vld [vmem:[%s231] sm:$0x3]
        %v254 = vld [vmem:[%s240] sm:$0xf]
        %v255 = vld [vmem:[%s240 + $0x4] sm:$0xf]
        %v256 = vld [vmem:[%s240 + $0x8] sm:$0xf]
        %v257 = vld [vmem:[%s240 + $0xc] sm:$0xf]
        %v258 = vld [vmem:[%s240 + $0x10] sm:$0xf]
        %v259 = vld [vmem:[%s240 + $0x14] sm:$0xf]
        %v260 = vld [vmem:[%s240 + $0x18] sm:$0xf]
        %v261 = vld [vmem:[%s240 + $0x1c] sm:$0xf]
        %v262 = vld [vmem:[%s240 + $0x20] sm:$0xf]
        %v263 = vld [vmem:[%s240 + $0x24] sm:$0xf]
        %v264 = vld [vmem:[%s240 + $0x28] sm:$0xf]
        %v265 = vld [vmem:[%s240 + $0x2c] sm:$0xf]
        %v266 = vld [vmem:[%s240 + $0x30] sm:$0xf]
        %v267 = vld [vmem:[%s240 + $0x34] sm:$0xf]
        %v268 = vld [vmem:[%s240 + $0x38] sm:$0xf]
        %v269 = vld [vmem:[%s240 + $0x3c] sm:$0xf]
        %v270 = vld [vmem:[%s240 + $0x40] sm:$0xf]
        %v271 = vld [vmem:[%s240 + $0x44] sm:$0xf]
        %v272 = vld [vmem:[%s240 + $0x48] sm:$0xf]
        %v273 = vld [vmem:[%s240 + $0x4c] sm:$0xf]
        %v274 = vld [vmem:[%s240 + $0x50] sm:$0xf]
        %v275 = vld [vmem:[%s240 + $0x54] sm:$0xf]
        %v276 = vld [vmem:[%s240 + $0x58] sm:$0xf]
        %v277 = vld [vmem:[%s240 + $0x5c] sm:$0xf]
        %v278 = vld [vmem:[%s240 + $0x60] sm:$0xf]
        %v279 = vld [vmem:[%s240 + $0x64] sm:$0xf]
        %v280 = vld [vmem:[%s240 + $0x68] sm:$0xf]
        %v281 = vld [vmem:[%s240 + $0x6c] sm:$0xf]
        %v282 = vld [vmem:[%s240 + $0x70] sm:$0xf]
        %v283 = vld [vmem:[%s240 + $0x74] sm:$0xf]
        %v284 = vld [vmem:[%s240 + $0x78] sm:$0xf]
        %v285 = vld [vmem:[%s240 + $0x7c] sm:$0xf]
        %v288 = vunpack.c.l.s4 1966171168
        %v289 = vunpack.c.0.s8 %v288
        %v290 = vlaneseq
        %v291 = vshrl.u32 %v290, 7
        %v292 = vsub.s32 %v289, %v291
        %v293 = vrot.slane %v253, %v292
        %v294 = vcombine.high %v293, %v293
        %v296 = vunpack.c.l.s4 1966171168
        %v297 = vunpack.c.0.s8 %v296
        %v298 = vlaneseq
        %v299 = vshrl.u32 %v298, 7
        %v300 = vsub.s32 %v297, %v299
        %v301 = vrot.slane %v293, %v300
        %v303 = vunpack.c.l.s4 1966171168
        %v304 = vunpack.c.0.s8 %v303
        %v305 = vlaneseq
        %v306 = vshrl.u32 %v305, 7
        %v307 = vsub.s32 %v304, %v306
        %v308 = vrot.slane %v294, %v307
        %v343 = vunpack.c.l.b16 %v254
        %v344 = vunpack.c.l.b16 %v255
        %v345 = vunpack.c.l.b16 %v256
        %v346 = vunpack.c.l.b16 %v257
        %v347 = vunpack.c.l.b16 %v258
        %v348 = vunpack.c.l.b16 %v259
        %v349 = vunpack.c.l.b16 %v260
        %v350 = vunpack.c.l.b16 %v261
        %v351 = vunpack.c.l.b16 %v262
        %v352 = vunpack.c.l.b16 %v263
        %v353 = vunpack.c.l.b16 %v264
        %v354 = vunpack.c.l.b16 %v265
        %v355 = vunpack.c.l.b16 %v266
        %v356 = vunpack.c.l.b16 %v267
        %v357 = vunpack.c.l.b16 %v268
        %v358 = vunpack.c.l.b16 %v269
        %v359 = vunpack.c.l.b16 %v270
        %v360 = vunpack.c.l.b16 %v271
        %v361 = vunpack.c.l.b16 %v272
        %v362 = vunpack.c.l.b16 %v273
        %v363 = vunpack.c.l.b16 %v274
        %v364 = vunpack.c.l.b16 %v275
        %v365 = vunpack.c.l.b16 %v276
        %v366 = vunpack.c.l.b16 %v277
        %v367 = vunpack.c.l.b16 %v278
        %v368 = vunpack.c.l.b16 %v279
        %v369 = vunpack.c.l.b16 %v280
        %v370 = vunpack.c.l.b16 %v281
        %v371 = vunpack.c.l.b16 %v282
        %v372 = vunpack.c.l.b16 %v283
        %v373 = vunpack.c.l.b16 %v284
        %v374 = vunpack.c.l.b16 %v285
        %v375 = vpack.c.b16 %v344, %v343
        %v376 = vpack.c.b16 %v346, %v345
        %v377 = vpack.c.b16 %v348, %v347
        %v378 = vpack.c.b16 %v350, %v349
        %v379 = vpack.c.b16 %v352, %v351
        %v380 = vpack.c.b16 %v354, %v353
        %v381 = vpack.c.b16 %v356, %v355
        %v382 = vpack.c.b16 %v358, %v357
        %v383 = vpack.c.b16 %v360, %v359
        %v384 = vpack.c.b16 %v362, %v361
        %v385 = vpack.c.b16 %v364, %v363
        %v386 = vpack.c.b16 %v366, %v365
        %v387 = vpack.c.b16 %v368, %v367
        %v388 = vpack.c.b16 %v370, %v369
        %v389 = vpack.c.b16 %v372, %v371
        %v390 = vpack.c.b16 %v374, %v373
        %407 = vmatprep.subr.bf16.mxu0 0
        %408 = vmatpush1.bf16.msra.mxu0 %v375
        %409 = vmatprep.subr.bf16.mxu0 0
        %410 = vmatpush1.bf16.msra.mxu0 %v376
        %411 = vmatprep.subr.bf16.mxu0 0
        %412 = vmatpush1.bf16.msra.mxu0 %v377
        %413 = vmatprep.subr.bf16.mxu0 0
        %414 = vmatpush1.bf16.msra.mxu0 %v378
        %415 = vmatprep.subr.bf16.mxu0 0
        %416 = vmatpush1.bf16.msra.mxu0 %v379
        %417 = vmatprep.subr.bf16.mxu0 0
        %418 = vmatpush1.bf16.msra.mxu0 %v380
        %419 = vmatprep.subr.bf16.mxu0 0
        %420 = vmatpush1.bf16.msra.mxu0 %v381
        %421 = vmatprep.subr.bf16.mxu0 0
        %422 = vmatpush1.bf16.msra.mxu0 %v382
        %423 = vmatprep.subr.bf16.mxu0 0
        %424 = vmatpush1.bf16.msra.mxu0 %v383
        %425 = vmatprep.subr.bf16.mxu0 0
        %426 = vmatpush1.bf16.msra.mxu0 %v384
        %427 = vmatprep.subr.bf16.mxu0 0
        %428 = vmatpush1.bf16.msra.mxu0 %v385
        %429 = vmatprep.subr.bf16.mxu0 0
        %430 = vmatpush1.bf16.msra.mxu0 %v386
        %431 = vmatprep.subr.bf16.mxu0 0
        %432 = vmatpush1.bf16.msra.mxu0 %v387
        %433 = vmatprep.subr.bf16.mxu0 0
        %434 = vmatpush1.bf16.msra.mxu0 %v388
        %435 = vmatprep.subr.bf16.mxu0 0
        %436 = vmatpush1.bf16.msra.mxu0 %v389
        %437 = vmatprep.subr.bf16.mxu0 0
        %438 = vmatpush1.bf16.msra.mxu0 %v390
        %439 = vmatprep.mubr.bf16.mxu0 %v308
        %440 = vmatmul.mubr.bf16.gmra.mrb[0].mxu0 %v301
        %v441 = vpop.f32.mrb[0].mxu0
        %v442 = vadd.f32 0.0, %v441
        %v443 = vpop.f32.mrb[0].mxu0
        %v444 = vpop.f32.mrb[0].mxu0
        %v445 = vpop.f32.mrb[0].mxu0
        %446 = vdwg.mxu0
        %v447 = vadd.f32 %v252, %v442
        %vm448 = vcmask 254976
        %449 = vst.msk [vmem:[#allocation2] sm:$0x3] %vm448, %v447
        %p450 = scmp.eq.s32.totalorder %s24, 2
        // Predicated region
        $region37: #{tpu_custom_call.1} parent=31 // pred_check
          %p451 = pneg %p450
        $region38: #{tpu_custom_call.1} parent=31 // pred_check_branch
          %453 = sbr.rel (%p451) target = $region40
        $region39: #{tpu_custom_call.1} parent=31 // pred_region
          %s454 = sld [smem:[#allocation4]]
          %p455 = scmp.eq.s32.totalorder %s454, 1
          %s456 = scalar_select %p455, 0.003921569, 1.0
          %v457 = vld [vmem:[#allocation2] sm:$0x3]
          %v458 = vstv %s456
          %v459 = vmul.f32 %v457, %v458
          %v460 = vld [vmem:[%s244] sm:$0x1]
          %v462 = vlaneseq
          %v463 = vshrl.u32 %v462, 7
          %v464 = vsub.s32 0, %v463
          %v465 = vrot.slane %v460, %v464
          %v467 = vadd.f32 %v459, %v465
          %468 = vst.msk [vmem:[#allocation5] sm:$0x3] %vm448, %v467
        $region40: #{tpu_custom_call.1} parent=31 // pred_fallthru
          _
        // Predicated region
        $region41: #{tpu_custom_call.1} parent=31 // pred_check
          %p469 = pneg %p138
        $region42: #{tpu_custom_call.1} parent=31 // pred_check_branch
          %471 = sbr.rel (%p469) target = $region44
        $region43: #{tpu_custom_call.1} parent=31 // pred_region
          %s473 = ssub.s32 32, 32
          %474 = vsyncadd [#allocation6], %s473
          %s475 = sadd.s32 %s23, %s22
          %s476 = smul.addr %s475, 32
          %s477 = scalar_lea.hbm %s4, %s476
          %s479 = sshll.u32 [#allocation5], 4
          %s480 = int_to_ptr.vmem [resolvable:$true] %s479
          %482 = dma.vmem_to_hbm [thread:$0]  %s480, 32, %s477, [#allocation6]
        $region44: #{tpu_custom_call.1} parent=31 // pred_fallthru
          _
        // Predicated region
        $region45: #{tpu_custom_call.1} parent=31 // pred_check
          %p483 = pneg %p138
        $region46: #{tpu_custom_call.1} parent=31 // pred_check_branch
          %485 = sbr.rel (%p483) target = $region48
        $region47: #{tpu_custom_call.1} parent=31 // pred_region
          %486 = dma.done [#allocation6], 32
        $region48: #{tpu_custom_call.1} parent=31 // pred_fallthru
          _
      $region32: #{tpu_custom_call.1} parent=5 // pred_fallthru
        _
      %p487 = scmp.le.s32.totalorder 2, %s12
      // Predicated region
      $region49: #{tpu_custom_call.1} parent=5 // pred_check
        %p488 = pneg %p487
      $region50: #{tpu_custom_call.1} parent=5 // pred_check_branch
        %490 = sbr.rel (%p488) target = $region52
      $region51: #{tpu_custom_call.1} parent=5 // pred_region
        %s491 = ssub.s32 %s12, 2
      $region52: #{tpu_custom_call.1} parent=5 // pred_fallthru
        _
    $region6: #{tpu_custom_call.1} parent=1 // loop_footer
      %s16 = sadd.s32 1, %s12
    $region7: #{tpu_custom_call.1} parent=1 // loop_footer_branch
      %11 = sbr.rel target = $region3
    $region8: #{tpu_custom_call.1} parent=1 // loop_exit
      _
    %492 = vsyncpa [#allocation6], 1
    %s493 = scalar_lea.sflag [#allocation6], 1
    %494 = vsyncpa %s493, 1

</llo_original>
